<compile_context>
chip_gen: v7x
topology: tpu7x:2x2x1
jax: 0.10.0
libtpu: 0.0.40
codegen_flags: <defaults>
</compile_context>

<pallas_src>
import functools

import jax
import jax.numpy as jnp
from jax.experimental import pallas as pl
from jax.experimental.pallas import tpu as pltpu


def _round_up(x, m):
    return ((x + m - 1) // m) * m


def _cls_conv_head_kernel(x_ref, w_ref, b_ref, o_ref, acc_ref, *,
                          inv_hw, c_total, c_blk, mask_c):
    # x_ref: (n_blk, c_blk, HW) native dtype      w_ref: (c_blk, O_pad) x's dtype
    # b_ref: (1, O_pad) float32                   o_ref: (n_blk, O_pad)
    # acc_ref: (n_blk, O_pad) float32 scratch, persistent across the C grid axis.
    c_step = pl.program_id(1)

    @pl.when(c_step == 0)
    def _init():
        acc_ref[...] = jnp.zeros_like(acc_ref)

    # Partial spatial mean of this channel chunk: lane-axis reduce with f32 accumulation
    # (no materialized f32 copy of the native-dtype tile).
    pooled = jnp.sum(x_ref[...], axis=2, dtype=jnp.float32) * inv_hw      # (n_blk, c_blk)

    if mask_c:
        # Last C block may read past the true channel count -> zero those columns.
        cidx = c_step * c_blk + jax.lax.broadcasted_iota(jnp.int32, pooled.shape, 1)
        pooled = jnp.where(cidx < c_total, pooled, 0.0)

    # Accumulate this chunk's contribution on the MXU in the weight's native dtype.
    acc_ref[...] += jnp.dot(pooled.astype(w_ref.dtype), w_ref[...],
                            preferred_element_type=jnp.float32)

    @pl.when(c_step == pl.num_programs(1) - 1)
    def _epilogue():
        o_ref[...] = (acc_ref[...] + b_ref[...]).astype(o_ref.dtype)


def cls_conv_head(x_nchw, weight_oc, bias_o, *, n_block=None, c_block=None,
                  vmem_target_bytes=4 * 1024 * 1024):
    """ClsConvHead forward.

    x_nchw:    (N, C, H, W)
    weight_oc: (O, C)   -- PyTorch conv weight (O, C, 1, 1) squeezed
    bias_o:    (O,)
    returns    (N, O) in x's dtype (== x.view(N, -1) of the PyTorch module).
    """
    N, C, H, W = x_nchw.shape
    O = weight_oc.shape[0]
    HW = H * W
    itemsize = jnp.dtype(x_nchw.dtype).itemsize
    hw_lanes = _round_up(HW, 128)            # lane-padded VMEM width of one channel row

    # ---- batch tile: >=2 blocks for N >= 16 so the "parallel" axis spans both v7x TCs ----
    if n_block is not None:
        n_blk = max(1, min(n_block, N))
    elif N < 16:
        n_blk = N                            # single block == full dim (no 8-row constraint)
    else:
        n_blk = min(64, _round_up(-(-N // 2), 8))

    # ---- channel tile: fill ~vmem_target_bytes per x buffer -------------------------------
    if c_block is not None:
        c_blk = min(c_block, C)
        if c_blk < C:
            c_blk = max(8, (c_blk // 8) * 8)
    else:
        def _fit_c(nb):
            row_bytes = max(1, nb * hw_lanes * itemsize)
            return (vmem_target_bytes // row_bytes) // 8 * 8
        c_blk = _fit_c(n_blk)
        while c_blk < 8 and n_blk > 1:       # very large HW: shrink the batch tile first
            n_blk = max(1, n_blk // 2) if N < 16 else max(8, ((n_blk // 2) // 8) * 8)
            c_blk = _fit_c(n_blk)
            if n_blk in (1, 8):
                break
        c_blk = max(8, c_blk)
    if c_blk >= C:
        c_blk = C                            # full dim: always a legal block size

    n_tiles = -(-N // n_blk)
    N_out = n_tiles * n_blk
    c_tiles = -(-C // c_blk)
    C_pad = c_tiles * c_blk
    mask_c = C_pad != C

    O_pad = _round_up(O, 128)                # lane-dense output stores

    # ---- operands (only the tiny weight/bias get padded; x is just reshaped) --------------
    x_r = x_nchw.reshape(N, C, HW)                               # free: NCHW is contiguous
    w_p = jnp.pad(weight_oc.astype(x_nchw.dtype).T,              # (C_pad, O_pad), x's dtype
                  ((0, C_pad - C), (0, O_pad - O)))
    b_p = jnp.pad(bias_o.astype(jnp.float32), (0, O_pad - O)).reshape(1, O_pad)

    grid = (n_tiles, c_tiles)
    kernel = functools.partial(_cls_conv_head_kernel, inv_hw=1.0 / float(HW),
                               c_total=C, c_blk=c_blk, mask_c=mask_c)

    cost = pl.CostEstimate(
        flops=N * C * HW + 2 * N * C * O_pad,
        transcendentals=0,
        bytes_accessed=(x_r.size * itemsize
                        + w_p.size * jnp.dtype(w_p.dtype).itemsize
                        + b_p.size * 4
                        + N_out * O_pad * itemsize),
    )

    out = pl.pallas_call(
        kernel,
        out_shape=jax.ShapeDtypeStruct((N_out, O_pad), x_nchw.dtype),
        grid_spec=pltpu.PrefetchScalarGridSpec(
            num_scalar_prefetch=0,
            grid=grid,
            in_specs=[
                # x: streamed + double-buffered along the C reduction axis (HW full on lanes).
                pl.BlockSpec((n_blk, c_blk, HW), lambda n, c: (n, c, 0)),
                # weight chunk for this C block (stays resident when c_tiles == 1).
                pl.BlockSpec((c_blk, O_pad), lambda n, c: (c, 0)),
                # bias: constant block index -> VMEM-resident.
                pl.BlockSpec((1, O_pad), lambda n, c: (0, 0)),
            ],
            out_specs=pl.BlockSpec((n_blk, O_pad), lambda n, c: (n, 0)),
            scratch_shapes=[pltpu.VMEM((n_blk, O_pad), jnp.float32)],
        ),
        compiler_params=pltpu.CompilerParams(
            dimension_semantics=("parallel", "arbitrary"),
            vmem_limit_bytes=32 * 1024 * 1024,
        ),
        cost_estimate=cost,
    )(x_r, w_p, b_p)

    return out[:N, :O]


if __name__ == "__main__":
    key = jax.random.PRNGKey(0)
    k_x, k_w, k_b, k_x2, k_w2, k_b2 = jax.random.split(key, 6)

    # --- toy case matching the module spec -------------------------------------------------
    N, C, H, W = 2, 4, 16, 16
    O = 8  # output_dim
    x = jax.random.normal(k_x, (N, C, H, W), dtype=jnp.float32)
    bound = 1.0 / (C ** 0.5)
    weight = jax.random.uniform(k_w, (O, C), minval=-bound, maxval=bound, dtype=jnp.float32)
    bias = jax.random.uniform(k_b, (O,), minval=-bound, maxval=bound, dtype=jnp.float32)

    ref = x.mean(axis=(2, 3)) @ weight.T + bias
    out = cls_conv_head(x, weight, bias)
    jax.block_until_ready(out)
    assert out.shape == (N, O)
    assert jnp.allclose(out, ref, atol=1e-4, rtol=1e-4)

    # --- streaming path: multiple C chunks (masked last block), partial N block, HW % 128 != 0
    N2, C2, H2, W2, O2 = 20, 20, 7, 7, 10
    x2 = jax.random.normal(k_x2, (N2, C2, H2, W2), dtype=jnp.float32)
    bound2 = 1.0 / (C2 ** 0.5)
    w2 = jax.random.uniform(k_w2, (O2, C2), minval=-bound2, maxval=bound2, dtype=jnp.float32)
    b2 = jax.random.uniform(k_b2, (O2,), minval=-bound2, maxval=bound2, dtype=jnp.float32)

    ref2 = x2.mean(axis=(2, 3)) @ w2.T + b2
    out2 = cls_conv_head(x2, w2, b2, c_block=8)
    jax.block_until_ready(out2)
    assert out2.shape == (N2, O2)
    assert jnp.allclose(out2, ref2, atol=1e-4, rtol=1e-4)

    print("KERNEL_OK")
</pallas_src>

<mosaic_0001>
module attributes {stable_mosaic.version = 11 : i64} {
  func.func @_cls_conv_head_kernel(%arg0: i32, %arg1: i32, %arg2: memref<2x4x256xf32, #tpu.memory_space<vmem>>, %arg3: memref<4x128xf32, #tpu.memory_space<vmem>>, %arg4: memref<1x128xf32, #tpu.memory_space<vmem>>, %arg5: memref<2x128xf32, #tpu.memory_space<vmem>>, %arg6: memref<2x128xf32, #tpu.memory_space<vmem>>) attributes {dimension_semantics = [#tpu.dimension_semantics<parallel>, #tpu.dimension_semantics<arbitrary>], iteration_bounds = array<i64: 1, 1>, scalar_prefetch = 0 : i64, scratch_operands = 1 : i64, tpu.core_type = #tpu.core_type<tc>, window_params = [{transform_indices = @transform_0, window_bounds = array<i64: 2, 4, 256>}, {transform_indices = @transform_1, window_bounds = array<i64: 4, 128>}, {pipeline_mode = #tpu.pipeline_mode<synchronous>, transform_indices = @transform_2, window_bounds = array<i64: 1, 128>}, {transform_indices = @transform_3, window_bounds = array<i64: 2, 128>}]} {
    %c0_i32 = arith.constant 0 : i32
    %0 = arith.cmpi eq, %arg1, %c0_i32 : i32
    %1 = arith.extui %0 : i1 to i32
    %c0_i32_0 = arith.constant 0 : i32
    %2 = arith.cmpi ne, %1, %c0_i32_0 : i32
    scf.if %2 {
      %cst_13 = arith.constant 0.000000e+00 : f32
      %15 = vector.broadcast %cst_13 : f32 to vector<2x128xf32>
      %c0_14 = arith.constant 0 : index
      %c0_15 = arith.constant 0 : index
      %16 = vector.load %arg6[%c0_14, %c0_15] : memref<2x128xf32, #tpu.memory_space<vmem>>, vector<2x128xf32>
      tpu.vector_store %arg6[%c0_14, %c0_15], %15 {strides = array<i32>} : memref<2x128xf32, #tpu.memory_space<vmem>>, vector<2x128xf32>,
    } else {
    }
    %c0 = arith.constant 0 : index
    %c0_1 = arith.constant 0 : index
    %c0_2 = arith.constant 0 : index
    %3 = vector.load %arg2[%c0, %c0_1, %c0_2] : memref<2x4x256xf32, #tpu.memory_space<vmem>>, vector<2x4x256xf32>
    %cst = arith.constant dense<0.000000e+00> : vector<2x4xf32>
    %4 = vector.multi_reduction <add>, %3, %cst [2] : vector<2x4x256xf32> to vector<2x4xf32>
    %cst_3 = arith.constant 3.906250e-03 : f32
    %5 = vector.broadcast %cst_3 : f32 to vector<2x4xf32>
    %6 = arith.mulf %4, %5 : vector<2x4xf32>
    %c0_4 = arith.constant 0 : index
    %c0_5 = arith.constant 0 : index
    %7 = vector.load %arg6[%c0_4, %c0_5] : memref<2x128xf32, #tpu.memory_space<vmem>>, vector<2x128xf32>
    %c0_6 = arith.constant 0 : index
    %c0_7 = arith.constant 0 : index
    %8 = vector.load %arg3[%c0_6, %c0_7] : memref<4x128xf32, #tpu.memory_space<vmem>>, vector<4x128xf32>
    %cst_8 = arith.constant dense<0.000000e+00> : vector<2x128xf32>
    %9 = tpu.matmul %6, %8, %cst_8 {dimension_numbers = #tpu.dot_dimension_numbers<[1], [0], [0], [1], [0, 0, 1, 1], [], []>} : vector<2x4xf32>, vector<4x128xf32>, vector<2x128xf32> -> vector<2x128xf32>
    %10 = arith.addf %7, %9 : vector<2x128xf32>
    %c0_9 = arith.constant 0 : index
    %c0_10 = arith.constant 0 : index
    %11 = vector.load %arg6[%c0_9, %c0_10] : memref<2x128xf32, #tpu.memory_space<vmem>>, vector<2x128xf32>
    tpu.vector_store %arg6[%c0_9, %c0_10], %10 {strides = array<i32>} : memref<2x128xf32, #tpu.memory_space<vmem>>, vector<2x128xf32>,
    %c0_i32_11 = arith.constant 0 : i32
    %12 = arith.cmpi eq, %arg1, %c0_i32_11 : i32
    %13 = arith.extui %12 : i1 to i32
    %c0_i32_12 = arith.constant 0 : i32
    %14 = arith.cmpi ne, %13, %c0_i32_12 : i32
    scf.if %14 {
      %c0_13 = arith.constant 0 : index
      %c0_14 = arith.constant 0 : index
      %15 = vector.load %arg6[%c0_13, %c0_14] : memref<2x128xf32, #tpu.memory_space<vmem>>, vector<2x128xf32>
      %c0_15 = arith.constant 0 : index
      %c0_16 = arith.constant 0 : index
      %16 = vector.load %arg4[%c0_15, %c0_16] : memref<1x128xf32, #tpu.memory_space<vmem>>, vector<1x128xf32>
      %17 = vector.broadcast %16 : vector<1x128xf32> to vector<2x128xf32>
      %18 = arith.addf %15, %17 : vector<2x128xf32>
      %c0_17 = arith.constant 0 : index
      %c0_18 = arith.constant 0 : index
      %19 = vector.load %arg5[%c0_17, %c0_18] : memref<2x128xf32, #tpu.memory_space<vmem>>, vector<2x128xf32>
      tpu.vector_store %arg5[%c0_17, %c0_18], %18 {strides = array<i32>} : memref<2x128xf32, #tpu.memory_space<vmem>>, vector<2x128xf32>,
    } else {
    }
    return
  }
  func.func @transform_0(%arg0: i32, %arg1: i32) -> (i32, i32, i32) {
    %c0_i32 = arith.constant 0 : i32
    %c0_i32_0 = arith.constant 0 : i32
    return %arg0, %arg1, %c0_i32 : i32, i32, i32
  }
  func.func @transform_1(%arg0: i32, %arg1: i32) -> (i32, i32) {
    %c0_i32 = arith.constant 0 : i32
    %c0_i32_0 = arith.constant 0 : i32
    return %arg1, %c0_i32 : i32, i32
  }
  func.func @transform_2(%arg0: i32, %arg1: i32) -> (i32, i32) {
    %c0_i32 = arith.constant 0 : i32
    %c0_i32_0 = arith.constant 0 : i32
    %c0_i32_1 = arith.constant 0 : i32
    return %c0_i32, %c0_i32_0 : i32, i32
  }
  func.func @transform_3(%arg0: i32, %arg1: i32) -> (i32, i32) {
    %c0_i32 = arith.constant 0 : i32
    %c0_i32_0 = arith.constant 0 : i32
    return %arg0, %c0_i32 : i32, i32
  }
}

</mosaic_0001>

<llo_original>
// kernel: tpu_custom_call.1
$region0: #{tpu_custom_call.1}
  #allocation0 [shape = 'u32[]', space=smem, size = 0x4, offset = 0x4, fixed_abs, tag = 'smem constant byte address 0x4 - core index']
  #allocation1 [shape = 'u32[144,128]{1,0:T(1,128)}', space=vmem, size = 0x12000, scoped, tag = 'internal scratch']
  #allocation2 [shape = 'f32[2,128]{1,0:T(2,128)}', space=vmem, size = 0x400, scoped, tag = 'scratch operand']
  %s0 = inlined_call_operand.hbm [shape: f32[2,4,256], index: 0, kind: input, shape index: {}]
  %s1 = inlined_call_operand.hbm [shape: f32[4,128], index: 1, kind: input, shape index: {}]
  %s2 = inlined_call_operand.vmem [shape: f32[1,128], index: 2, kind: input, shape index: {}]
  %s3 = inlined_call_operand.hbm [shape: f32[2,128], index: 3, kind: output, shape index: {}]
  %s4 = sld [smem:[#allocation0]]
  $region38: #{tpu_custom_call.1} parent=0
    _
  %s6 = ssub.s32 1, %s4
  %s7 = scalar_select 0, %s6, %s4
  $region1: #{tpu_custom_call.1} parent=0
    #allocation3 [shape = 'u8[8192]{0}', space=vmem, size = 0x2000, scoped, tag = 'input window, operand 0, single buffered']
    #allocation4 [shape = 's32[1]{0}', space=sflag, size = 0x4, scoped, tag = 'scoped memory for tpu_custom_call.1']
    #allocation5 [shape = 's32[1]{0}', space=sflag, size = 0x4, scoped, tag = 'scoped memory for tpu_custom_call.1']
    #allocation6 [shape = 'u8[2048]{0}', space=vmem, size = 0x800, scoped, tag = 'input window, operand 1, single buffered']
    #allocation7 [shape = 's32[1]{0}', space=sflag, size = 0x4, scoped, tag = 'scoped memory for tpu_custom_call.1']
    #allocation8 [shape = 'u8[1024]{0}', space=vmem, size = 0x400, scoped, tag = 'output window, operand 0, single buffered']
    %8 = vsyncpa [#allocation4], 0
    %9 = vsyncpa [#allocation7], 0
    %10 = vsyncpa [#allocation5], 0
    // Predicated region
    $region2: #{tpu_custom_call.1} parent=1 // pred_check
      _
    $region3: #{tpu_custom_call.1} parent=1 // pred_check_branch
      %12 = sbr.rel (0) target = $region5
    $region4: #{tpu_custom_call.1} parent=1 // pred_region
      %s14 = ssub.s32 256, 256
      %15 = vsyncadd [#allocation4], %s14
      %s16 = sshll.u32 [#allocation3], 4
      %s17 = int_to_ptr.vmem [resolvable:$true] %s16
      %22 = dma.hbm_to_vmem [thread:$0]  %s0, 256, %s17, [#allocation4], 128, 128, 8
    $region5: #{tpu_custom_call.1} parent=1 // pred_fallthru
      _
    // Predicated region
    $region6: #{tpu_custom_call.1} parent=1 // pred_check
      _
    $region7: #{tpu_custom_call.1} parent=1 // pred_check_branch
      %24 = sbr.rel (0) target = $region9
    $region8: #{tpu_custom_call.1} parent=1 // pred_region
      %s26 = ssub.s32 64, 64
      %27 = vsyncadd [#allocation7], %s26
      %s29 = sshll.u32 [#allocation6], 4
      %s30 = int_to_ptr.vmem [resolvable:$true] %s29
      %32 = dma.hbm_to_vmem [thread:$0]  %s1, 64, %s30, [#allocation7]
    $region9: #{tpu_custom_call.1} parent=1 // pred_fallthru
      _
    // Predicated region
    $region10: #{tpu_custom_call.1} parent=1 // pred_check
      _
    $region11: #{tpu_custom_call.1} parent=1 // pred_check_branch
      %34 = sbr.rel (0) target = $region13
    $region12: #{tpu_custom_call.1} parent=1 // pred_region
      _
    $region13: #{tpu_custom_call.1} parent=1 // pred_fallthru
      _
    // Predicated region
    $region14: #{tpu_custom_call.1} parent=1 // pred_check
      _
    $region15: #{tpu_custom_call.1} parent=1 // pred_check_branch
      %36 = sbr.rel (0) target = $region17
    $region16: #{tpu_custom_call.1} parent=1 // pred_region
      %37 = dma.done [#allocation4], 256
    $region17: #{tpu_custom_call.1} parent=1 // pred_fallthru
      _
    // Predicated region
    $region18: #{tpu_custom_call.1} parent=1 // pred_check
      _
    $region19: #{tpu_custom_call.1} parent=1 // pred_check_branch
      %39 = sbr.rel (0) target = $region21
    $region20: #{tpu_custom_call.1} parent=1 // pred_region
      %40 = dma.done [#allocation7], 64
    $region21: #{tpu_custom_call.1} parent=1 // pred_fallthru
      _
    %p41 = scmp.eq.s32.totalorder 0, 0
    // Predicated region
    $region22: #{tpu_custom_call.1} parent=1 // pred_check
      %p42 = pneg %p41
    $region23: #{tpu_custom_call.1} parent=1 // pred_check_branch
      %44 = sbr.rel (%p42) target = $region25
    $region24: #{tpu_custom_call.1} parent=1 // pred_region
      %45 = vst [vmem:[#allocation2] sm:$0x3] 0.0
    $region25: #{tpu_custom_call.1} parent=1 // pred_fallthru
      _
    %v46 = vld [vmem:[#allocation3] sm:$0xff]
    %v47 = vld [vmem:[#allocation3 + $0x8] sm:$0xff]
    %v50 = vcombine.high %v46, %v46
    %v51 = vcombine.high %v47, %v47
    %vm54 = vcmask 1043456
    %v55 = vsel %vm54, %v46, 0.0
    %v56 = vsel %vm54, %v50, 0.0
    %v57 = vadd.f32 %v55, %v56
    %58 = vadd.xlane.f32.xlu0 %v57
    %v59 = vpop.xlane.xlu0 %58
    %v60 = vsel %vm54, %v47, 0.0
    %v61 = vsel %vm54, %v51, 0.0
    %v62 = vadd.f32 %v60, %v61
    %63 = vadd.xlane.f32.xlu0 %v62
    %v64 = vpop.xlane.xlu0 %63
    %v65 = vmul.f32 %v59, 0.00390625
    %v66 = vmul.f32 %v64, 0.00390625
    %v67 = vld [vmem:[#allocation2] sm:$0x3]
    %v68 = vld [vmem:[#allocation6] sm:$0xf]
    %v71 = vlaneseq
    %v72 = vand.u32 %v71, 127
    %v73 = vlaneseq
    %v74 = vshrl.u32 %v73, 7
    %v75 = vsub.s32 %v72, %v74
    %v76 = vrot.slane %v65, %v75
    %v77 = vlaneseq
    %v78 = vshrl.u32 %v77, 7
    %v79 = vsub.s32 %v72, %v78
    %v80 = vrot.slane %v66, %v79
    %vm81 = vcmask 1041409
    %v82 = vsel %vm81, %v80, %v76
    %vm83 = vcmask 31744
    %v84 = vsel %vm83, %v82, 0
    %v87 = vsel %vm54, %v68, 0
    %89 = vmatprep.subr.mxu0 0.0
    %90 = vmatpush1.msra.mxu0 %v87
    %91 = vmatprep.subr.mxu0 0.0
    %92 = vmatpush1.msra.mxu0 0.0
    %93 = vmatprep.subr.mxu0 0.0
    %94 = vmatpush1.msra.mxu0 0.0
    %95 = vmatprep.subr.mxu0 0.0
    %96 = vmatpush1.msra.mxu0 0.0
    %97 = vmatprep.subr.mxu0 0.0
    %98 = vmatpush1.msra.mxu0 0.0
    %99 = vmatprep.subr.mxu0 0.0
    %100 = vmatpush1.msra.mxu0 0.0
    %101 = vmatprep.subr.mxu0 0.0
    %102 = vmatpush1.msra.mxu0 0.0
    %103 = vmatprep.subr.mxu0 0.0
    %104 = vmatpush1.msra.mxu0 0.0
    %105 = vmatprep.subr.mxu0 0.0
    %106 = vmatpush1.msra.mxu0 0.0
    %107 = vmatprep.subr.mxu0 0.0
    %108 = vmatpush1.msra.mxu0 0.0
    %109 = vmatprep.subr.mxu0 0.0
    %110 = vmatpush1.msra.mxu0 0.0
    %111 = vmatprep.subr.mxu0 0.0
    %112 = vmatpush1.msra.mxu0 0.0
    %113 = vmatprep.subr.mxu0 0.0
    %114 = vmatpush1.msra.mxu0 0.0
    %115 = vmatprep.subr.mxu0 0.0
    %116 = vmatpush1.msra.mxu0 0.0
    %117 = vmatprep.subr.mxu0 0.0
    %118 = vmatpush1.msra.mxu0 0.0
    %119 = vmatprep.subr.mxu0 0.0
    %120 = vmatpush1.msra.mxu0 0.0
    %121 = vmatprep.subr.mxu0 0.0
    %122 = vmatpush1.msra.mxu0 0.0
    %123 = vmatprep.subr.mxu0 0.0
    %124 = vmatpush1.msra.mxu0 0.0
    %125 = vmatprep.subr.mxu0 0.0
    %126 = vmatpush1.msra.mxu0 0.0
    %127 = vmatprep.subr.mxu0 0.0
    %128 = vmatpush1.msra.mxu0 0.0
    %129 = vmatprep.subr.mxu0 0.0
    %130 = vmatpush1.msra.mxu0 0.0
    %131 = vmatprep.subr.mxu0 0.0
    %132 = vmatpush1.msra.mxu0 0.0
    %133 = vmatprep.subr.mxu0 0.0
    %134 = vmatpush1.msra.mxu0 0.0
    %135 = vmatprep.subr.mxu0 0.0
    %136 = vmatpush1.msra.mxu0 0.0
    %137 = vmatprep.subr.mxu0 0.0
    %138 = vmatpush1.msra.mxu0 0.0
    %139 = vmatprep.subr.mxu0 0.0
    %140 = vmatpush1.msra.mxu0 0.0
    %141 = vmatprep.subr.mxu0 0.0
    %142 = vmatpush1.msra.mxu0 0.0
    %143 = vmatprep.subr.mxu0 0.0
    %144 = vmatpush1.msra.mxu0 0.0
    %145 = vmatprep.subr.mxu0 0.0
    %146 = vmatpush1.msra.mxu0 0.0
    %147 = vmatprep.subr.mxu0 0.0
    %148 = vmatpush1.msra.mxu0 0.0
    %149 = vmatprep.subr.mxu0 0.0
    %150 = vmatpush1.msra.mxu0 0.0
    %151 = vmatprep.subr.mxu0 0.0
    %152 = vmatpush1.msra.mxu0 0.0
    %153 = vmatprep.mubr.f32.mxu0 0.0
    %154 = vmatmul.mubr.f32.gmra.mrb[0].mxu0 %v84
    %v155 = vpop.f32.mrb[0].mxu0
    %v156 = vadd.f32 0.0, %v155
    %v157 = vpop.f32.mrb[0].mxu0
    %158 = vdwg.mxu0
    %v159 = vadd.f32 %v67, %v156
    %160 = vst [vmem:[#allocation2] sm:$0x3] %v159
    // Predicated region
    $region26: #{tpu_custom_call.1} parent=1 // pred_check
      %p161 = pneg %p41
    $region27: #{tpu_custom_call.1} parent=1 // pred_check_branch
      %163 = sbr.rel (%p161) target = $region29
    $region28: #{tpu_custom_call.1} parent=1 // pred_region
      %v164 = vld [vmem:[#allocation2] sm:$0x3]
      %v165 = vld [vmem:[%s2] sm:$0x1]
      %v167 = vlaneseq
      %v168 = vshrl.u32 %v167, 7
      %v169 = vsub.s32 0, %v168
      %v170 = vrot.slane %v165, %v169
      %v172 = vadd.f32 %v164, %v170
      %173 = vst [vmem:[#allocation8] sm:$0x3] %v172
    $region29: #{tpu_custom_call.1} parent=1 // pred_fallthru
      _
    // Predicated region
    $region30: #{tpu_custom_call.1} parent=1 // pred_check
      _
    $region31: #{tpu_custom_call.1} parent=1 // pred_check_branch
      %175 = sbr.rel (0) target = $region33
    $region32: #{tpu_custom_call.1} parent=1 // pred_region
      %s177 = ssub.s32 32, 32
      %178 = vsyncadd [#allocation5], %s177
      %s180 = sshll.u32 [#allocation8], 4
      %s181 = int_to_ptr.vmem [resolvable:$true] %s180
      %183 = dma.vmem_to_hbm [thread:$0]  %s181, 32, %s3, [#allocation5]
    $region33: #{tpu_custom_call.1} parent=1 // pred_fallthru
      _
    // Predicated region
    $region34: #{tpu_custom_call.1} parent=1 // pred_check
      _
    $region35: #{tpu_custom_call.1} parent=1 // pred_check_branch
      %185 = sbr.rel (0) target = $region37
    $region36: #{tpu_custom_call.1} parent=1 // pred_region
      %186 = dma.done [#allocation5], 32
    $region37: #{tpu_custom_call.1} parent=1 // pred_fallthru
      _
    %187 = vsyncpa [#allocation4], 1
    %188 = vsyncpa [#allocation7], 1
    %189 = vsyncpa [#allocation5], 1

</llo_original>
